<compile_context>
chip_gen: v5e
topology: v5e:2x2
jax: 0.10.0
libtpu: 0.0.40
codegen_flags: <defaults>
</compile_context>

<pallas_src>
import numpy as np
import jax
import jax.numpy as jnp
from jax.experimental import pallas as pl
from jax.experimental.pallas import tpu as pltpu


def _interp_matmul_kernel(w_ref, x_ref, o_ref):
    # w_ref: (T_out, T) float32 interp matrix, resident (same block every grid step)
    # x_ref: (T, TN) lane tile of the flattened input
    # o_ref: (T_out, TN) lane tile of the output
    o_ref[...] = jnp.dot(
        w_ref[...],
        x_ref[...].astype(jnp.float32),
        preferred_element_type=jnp.float32,
    ).astype(o_ref.dtype)


def build_interp_matrix(t, t_out):
    """(t_out, t) float32 matrix implementing F.interpolate(mode='linear', align_corners=True).

    Built with numpy so it is a compile-time constant (no scatter ops in the JAX graph).
    """
    W = np.zeros((t_out, t), dtype=np.float32)
    if t_out == 1 or t == 1:
        # Degenerate case: every output sample equals x[0].
        W[:, 0] = 1.0
        return jnp.asarray(W)
    pos = np.arange(t_out, dtype=np.float64) * (t - 1) / (t_out - 1)
    lo = np.clip(np.floor(pos).astype(np.int64), 0, t - 2)
    frac = (pos - lo).astype(np.float32)
    j = np.arange(t_out)
    W[j, lo] += 1.0 - frac
    W[j, lo + 1] += frac
    return jnp.asarray(W)


def _choose_tn(t, t_out, n, itemsize):
    """Pick the lane-tile width: as large as a conservative VMEM budget allows."""
    # Per-lane VMEM bytes per pipeline stage:
    #   2 (double buffer) x itemsize x (T input rows + T_out output rows).
    per_lane = 2 * itemsize * (t + t_out)
    # 24 MiB budget stays well under the 32 MiB scoped default (v6e/v7x) and v7x's
    # 64 MiB physical VMEM; the explicit vmem_limit below covers v5e's 16 MiB default.
    budget = 24 * 1024 * 1024
    tn = budget // per_lane
    tn = min(tn, 32768)                    # diminishing returns past ~32K lanes
    tn = min(tn, pl.cdiv(n, 128) * 128)    # never wider than (rounded-up) N
    tn = max(128, (tn // 128) * 128)       # multiple of 128 lanes
    return int(tn)


def temporal_sr_pallas(x, t_upscale_factor, tn=None):
    """x: (T, B, C, H, W) -> (T * t_upscale_factor, B, C, H, W)."""
    t, b, c, h, w = x.shape
    t_out = t * t_upscale_factor
    N = b * c * h * w
    itemsize = jnp.dtype(x.dtype).itemsize

    if tn is None:
        tn = _choose_tn(t, t_out, N, itemsize)

    W = build_interp_matrix(t, t_out)   # float32 even for bf16 inputs
    x_flat = x.reshape(t, N)            # row-major contiguous -> free, no HBM copy

    # Grid over lane tiles; a tail tile (N % tn != 0) is handled by Pallas edge-block
    # masking.  Safe: each output column depends only on the same input column, so
    # garbage lanes never contaminate valid outputs, and OOB output lanes are masked
    # on store.
    grid = (pl.cdiv(N, tn),)

    # Live VMEM: double-buffered input + output tiles plus the tiny resident W
    # (lane-padded to 128).
    vmem_bytes = 2 * itemsize * (t + t_out) * tn + 2 * 4 * t_out * max(t, 128)
    vmem_limit = int(min(48 * 1024 * 1024, max(16 * 1024 * 1024, 2 * vmem_bytes)))

    cost = pl.CostEstimate(
        flops=2 * t_out * t * N,
        transcendentals=0,
        bytes_accessed=itemsize * (t + t_out) * N + 4 * t_out * t,
    )

    out_flat = pl.pallas_call(
        _interp_matmul_kernel,
        out_shape=jax.ShapeDtypeStruct((t_out, N), x.dtype),
        grid_spec=pltpu.PrefetchScalarGridSpec(
            num_scalar_prefetch=0,
            grid=grid,
            in_specs=[
                pl.BlockSpec((t_out, t), lambda i: (0, 0)),  # small, fetched once
                pl.BlockSpec((t, tn), lambda i: (0, i)),
            ],
            out_specs=pl.BlockSpec((t_out, tn), lambda i: (0, i)),
        ),
        compiler_params=pltpu.CompilerParams(
            dimension_semantics=("parallel",),   # shards lane tiles across TCs (v7x)
            vmem_limit_bytes=vmem_limit,
        ),
        cost_estimate=cost,
    )(W, x_flat)

    return out_flat.reshape(t_out, b, c, h, w)


def temporal_sr_reference(x, t_upscale_factor):
    """Pure-JAX reference matching F.interpolate(mode='linear', align_corners=True)."""
    t = x.shape[0]
    t_out = t * t_upscale_factor
    if t_out == 1 or t == 1:
        return jnp.broadcast_to(x[0], (t_out,) + x.shape[1:]).astype(x.dtype)
    pos = jnp.arange(t_out).astype(jnp.float32) * (t - 1) / (t_out - 1)
    lo = jnp.clip(jnp.floor(pos).astype(jnp.int32), 0, t - 2)
    frac = (pos - lo.astype(jnp.float32)).reshape(t_out, 1, 1, 1, 1)
    return x[lo] * (1.0 - frac) + x[lo + 1] * frac


if __name__ == "__main__":
    key = jax.random.PRNGKey(0)
    T, B, C, H, W_sp = 8, 2, 4, 16, 16
    t_upscale_factor = 2

    x = jax.random.normal(key, (T, B, C, H, W_sp), dtype=jnp.float32)

    out = temporal_sr_pallas(x, t_upscale_factor)
    out = jax.block_until_ready(out)

    ref = temporal_sr_reference(x, t_upscale_factor)
    assert out.shape == (T * t_upscale_factor, B, C, H, W_sp)
    assert jnp.allclose(out, ref, atol=1e-5, rtol=1e-5)

    # Exercise the partial edge-block path (N = 2*3*15*13 = 1170, not a multiple of 128).
    x2 = jax.random.normal(jax.random.PRNGKey(1), (T, 2, 3, 15, 13), dtype=jnp.float32)
    out2 = jax.block_until_ready(temporal_sr_pallas(x2, 3))
    ref2 = temporal_sr_reference(x2, 3)
    assert out2.shape == (T * 3, 2, 3, 15, 13)
    assert jnp.allclose(out2, ref2, atol=1e-5, rtol=1e-5)

    print("KERNEL_OK")
</pallas_src>

<mosaic_0001>
module attributes {stable_mosaic.version = 11 : i64} {
  func.func @_interp_matmul_kernel(%arg0: i32, %arg1: memref<16x8xf32, #tpu.memory_space<vmem>>, %arg2: memref<8x2048xf32, #tpu.memory_space<vmem>>, %arg3: memref<16x2048xf32, #tpu.memory_space<vmem>>) attributes {dimension_semantics = [#tpu.dimension_semantics<parallel>], iteration_bounds = array<i64: 1>, scalar_prefetch = 0 : i64, scratch_operands = 0 : i64, tpu.core_type = #tpu.core_type<tc>, window_params = [{pipeline_mode = #tpu.pipeline_mode<synchronous>, transform_indices = @transform_0, window_bounds = array<i64: 16, 8>}, {transform_indices = @transform_1, window_bounds = array<i64: 8, 2048>}, {transform_indices = @transform_2, window_bounds = array<i64: 16, 2048>}]} {
    %c0 = arith.constant 0 : index
    %c0_0 = arith.constant 0 : index
    %0 = vector.load %arg1[%c0, %c0_0] : memref<16x8xf32, #tpu.memory_space<vmem>>, vector<16x8xf32>
    %c0_1 = arith.constant 0 : index
    %c0_2 = arith.constant 0 : index
    %1 = vector.load %arg2[%c0_1, %c0_2] : memref<8x2048xf32, #tpu.memory_space<vmem>>, vector<8x2048xf32>
    %cst = arith.constant dense<0.000000e+00> : vector<16x2048xf32>
    %2 = tpu.matmul %0, %1, %cst {dimension_numbers = #tpu.dot_dimension_numbers<[1], [0], [0], [1], [0, 0, 1, 1], [], []>} : vector<16x8xf32>, vector<8x2048xf32>, vector<16x2048xf32> -> vector<16x2048xf32>
    %c0_3 = arith.constant 0 : index
    %c0_4 = arith.constant 0 : index
    %3 = vector.load %arg3[%c0_3, %c0_4] : memref<16x2048xf32, #tpu.memory_space<vmem>>, vector<16x2048xf32>
    tpu.vector_store %arg3[%c0_3, %c0_4], %2 {strides = array<i32>} : memref<16x2048xf32, #tpu.memory_space<vmem>>, vector<16x2048xf32>,
    return
  }
  func.func @transform_0(%arg0: i32) -> (i32, i32) {
    %c0_i32 = arith.constant 0 : i32
    %c0_i32_0 = arith.constant 0 : i32
    %c0_i32_1 = arith.constant 0 : i32
    return %c0_i32, %c0_i32_0 : i32, i32
  }
  func.func @transform_1(%arg0: i32) -> (i32, i32) {
    %c0_i32 = arith.constant 0 : i32
    %c0_i32_0 = arith.constant 0 : i32
    return %c0_i32, %arg0 : i32, i32
  }
  func.func @transform_2(%arg0: i32) -> (i32, i32) {
    %c0_i32 = arith.constant 0 : i32
    %c0_i32_0 = arith.constant 0 : i32
    return %c0_i32, %arg0 : i32, i32
  }
}

</mosaic_0001>

<llo_original>
// kernel: tpu_custom_call.1
$region0: #{tpu_custom_call.1}
  #allocation0 [shape = 'u32[]', space=smem, size = 0x4, offset = 0x4, fixed_abs, tag = 'smem constant byte address 0x4 - core index']
  #allocation1 [shape = 'u32[72,128]{1,0:T(1,128)}', space=vmem, size = 0x9000, scoped, tag = 'internal scratch']
  %s0 = inlined_call_operand.vmem [shape: f32[16,8], index: 0, kind: input, shape index: {}]
  %s1 = inlined_call_operand.hbm [shape: f32[8,2048], index: 1, kind: input, shape index: {}]
  %s2 = inlined_call_operand.hbm [shape: f32[16,2048], index: 2, kind: output, shape index: {}]
  %s3 = sld [smem:[#allocation0]]
  $region22: #{tpu_custom_call.1} parent=0
    _
  %s5 = ssub.s32 1, %s3
  %s6 = scalar_select 0, %s5, %s3
  $region1: #{tpu_custom_call.1} parent=0
    #allocation2 [shape = 'u8[65536]{0}', space=vmem, size = 0x10000, scoped, tag = 'input window, operand 1, single buffered']
    #allocation3 [shape = 's32[1]{0}', space=sflag, size = 0x4, scoped, tag = 'scoped memory for tpu_custom_call.1']
    #allocation4 [shape = 's32[1]{0}', space=sflag, size = 0x4, scoped, tag = 'scoped memory for tpu_custom_call.1']
    #allocation5 [shape = 'u8[131072]{0}', space=vmem, size = 0x20000, scoped, tag = 'output window, operand 0, single buffered']
    %7 = vsyncpa [#allocation3], 0
    %8 = vsyncpa [#allocation4], 0
    // Predicated region
    $region2: #{tpu_custom_call.1} parent=1 // pred_check
      _
    $region3: #{tpu_custom_call.1} parent=1 // pred_check_branch
      %10 = sbr.rel (0) target = $region5
    $region4: #{tpu_custom_call.1} parent=1 // pred_region
      _
    $region5: #{tpu_custom_call.1} parent=1 // pred_fallthru
      _
    // Predicated region
    $region6: #{tpu_custom_call.1} parent=1 // pred_check
      _
    $region7: #{tpu_custom_call.1} parent=1 // pred_check_branch
      %12 = sbr.rel (0) target = $region9
    $region8: #{tpu_custom_call.1} parent=1 // pred_region
      %14 = vsyncadd [#allocation3], 0
      %s16 = sshll.u32 %s1, 4
      %s17 = int_to_ptr.hbm [resolvable:$true] %s16
      %s18 = sshll.u32 [#allocation2], 4
      %s19 = int_to_ptr.vmem [resolvable:$true] %s18
      %21 = dma.hbm_to_vmem [thread:$0]  %s17, 2048, %s19, [#allocation3]
    $region9: #{tpu_custom_call.1} parent=1 // pred_fallthru
      _
    // Predicated region
    $region10: #{tpu_custom_call.1} parent=1 // pred_check
      _
    $region11: #{tpu_custom_call.1} parent=1 // pred_check_branch
      %23 = sbr.rel (0) target = $region13
    $region12: #{tpu_custom_call.1} parent=1 // pred_region
      %25 = dma.done [#allocation3], 2048
    $region13: #{tpu_custom_call.1} parent=1 // pred_fallthru
      _
    %v26 = vld [vmem:[%s0] sm:$0xff]
    %v27 = vld [vmem:[%s0 + $0x8] sm:$0xff]
    %v28 = vld [vmem:[#allocation2] sm:$0xff]
    %v29 = vld [vmem:[#allocation2 + $0x8] sm:$0xff]
    %v30 = vld [vmem:[#allocation2 + $0x10] sm:$0xff]
    %v31 = vld [vmem:[#allocation2 + $0x18] sm:$0xff]
    %v32 = vld [vmem:[#allocation2 + $0x20] sm:$0xff]
    %v33 = vld [vmem:[#allocation2 + $0x28] sm:$0xff]
    %v34 = vld [vmem:[#allocation2 + $0x30] sm:$0xff]
    %v35 = vld [vmem:[#allocation2 + $0x38] sm:$0xff]
    %v36 = vld [vmem:[#allocation2 + $0x40] sm:$0xff]
    %v37 = vld [vmem:[#allocation2 + $0x48] sm:$0xff]
    %v38 = vld [vmem:[#allocation2 + $0x50] sm:$0xff]
    %v39 = vld [vmem:[#allocation2 + $0x58] sm:$0xff]
    %v40 = vld [vmem:[#allocation2 + $0x60] sm:$0xff]
    %v41 = vld [vmem:[#allocation2 + $0x68] sm:$0xff]
    %v42 = vld [vmem:[#allocation2 + $0x70] sm:$0xff]
    %v43 = vld [vmem:[#allocation2 + $0x78] sm:$0xff]
    %vm44 = vcmask 64512
    %v46 = vsel %vm44, %v26, 0
    %v49 = vsel %vm44, %v27, 0
    %51 = vmatpush.msra.mxu0 0.0
    %52 = vmatpush.msra.mxu0 0.0
    %53 = vmatpush.msra.mxu0 0.0
    %54 = vmatpush.msra.mxu0 0.0
    %55 = vmatpush.msra.mxu0 0.0
    %56 = vmatpush.msra.mxu0 0.0
    %57 = vmatpush.msra.mxu0 0.0
    %58 = vmatpush.msra.mxu0 0.0
    %59 = vmatpush.msra.mxu0 0.0
    %60 = vmatpush.msra.mxu0 0.0
    %61 = vmatpush.msra.mxu0 0.0
    %62 = vmatpush.msra.mxu0 0.0
    %63 = vmatpush.msra.mxu0 0.0
    %64 = vmatpush.msra.mxu0 0.0
    %65 = vmatpush.msra.mxu0 0.0
    %66 = vmatpush.msra.mxu0 %v28
    %67 = vmatmul.f32.gmra.mxu0 %v46
    %v68 = vpop.f32.mrf.mxu0
    %v69 = vadd.f32 0.0, %v68
    %70 = vmatmul.f32.gmra.mxu0 %v49
    %v71 = vpop.f32.mrf.mxu0
    %v72 = vadd.f32 0.0, %v71
    %73 = vdwg.mxu0
    %74 = vmatpush.msra.mxu0 0.0
    %75 = vmatpush.msra.mxu0 0.0
    %76 = vmatpush.msra.mxu0 0.0
    %77 = vmatpush.msra.mxu0 0.0
    %78 = vmatpush.msra.mxu0 0.0
    %79 = vmatpush.msra.mxu0 0.0
    %80 = vmatpush.msra.mxu0 0.0
    %81 = vmatpush.msra.mxu0 0.0
    %82 = vmatpush.msra.mxu0 0.0
    %83 = vmatpush.msra.mxu0 0.0
    %84 = vmatpush.msra.mxu0 0.0
    %85 = vmatpush.msra.mxu0 0.0
    %86 = vmatpush.msra.mxu0 0.0
    %87 = vmatpush.msra.mxu0 0.0
    %88 = vmatpush.msra.mxu0 0.0
    %89 = vmatpush.msra.mxu0 %v29
    %90 = vmatmul.f32.gmra.mxu0 %v46
    %v91 = vpop.f32.mrf.mxu0
    %v92 = vadd.f32 0.0, %v91
    %93 = vmatmul.f32.gmra.mxu0 %v49
    %v94 = vpop.f32.mrf.mxu0
    %v95 = vadd.f32 0.0, %v94
    %96 = vdwg.mxu0
    %97 = vmatpush.msra.mxu0 0.0
    %98 = vmatpush.msra.mxu0 0.0
    %99 = vmatpush.msra.mxu0 0.0
    %100 = vmatpush.msra.mxu0 0.0
    %101 = vmatpush.msra.mxu0 0.0
    %102 = vmatpush.msra.mxu0 0.0
    %103 = vmatpush.msra.mxu0 0.0
    %104 = vmatpush.msra.mxu0 0.0
    %105 = vmatpush.msra.mxu0 0.0
    %106 = vmatpush.msra.mxu0 0.0
    %107 = vmatpush.msra.mxu0 0.0
    %108 = vmatpush.msra.mxu0 0.0
    %109 = vmatpush.msra.mxu0 0.0
    %110 = vmatpush.msra.mxu0 0.0
    %111 = vmatpush.msra.mxu0 0.0
    %112 = vmatpush.msra.mxu0 %v30
    %113 = vmatmul.f32.gmra.mxu0 %v46
    %v114 = vpop.f32.mrf.mxu0
    %v115 = vadd.f32 0.0, %v114
    %116 = vmatmul.f32.gmra.mxu0 %v49
    %v117 = vpop.f32.mrf.mxu0
    %v118 = vadd.f32 0.0, %v117
    %119 = vdwg.mxu0
    %120 = vmatpush.msra.mxu0 0.0
    %121 = vmatpush.msra.mxu0 0.0
    %122 = vmatpush.msra.mxu0 0.0
    %123 = vmatpush.msra.mxu0 0.0
    %124 = vmatpush.msra.mxu0 0.0
    %125 = vmatpush.msra.mxu0 0.0
    %126 = vmatpush.msra.mxu0 0.0
    %127 = vmatpush.msra.mxu0 0.0
    %128 = vmatpush.msra.mxu0 0.0
    %129 = vmatpush.msra.mxu0 0.0
    %130 = vmatpush.msra.mxu0 0.0
    %131 = vmatpush.msra.mxu0 0.0
    %132 = vmatpush.msra.mxu0 0.0
    %133 = vmatpush.msra.mxu0 0.0
    %134 = vmatpush.msra.mxu0 0.0
    %135 = vmatpush.msra.mxu0 %v31
    %136 = vmatmul.f32.gmra.mxu0 %v46
    %v137 = vpop.f32.mrf.mxu0
    %v138 = vadd.f32 0.0, %v137
    %139 = vmatmul.f32.gmra.mxu0 %v49
    %v140 = vpop.f32.mrf.mxu0
    %v141 = vadd.f32 0.0, %v140
    %142 = vdwg.mxu0
    %143 = vmatpush.msra.mxu0 0.0
    %144 = vmatpush.msra.mxu0 0.0
    %145 = vmatpush.msra.mxu0 0.0
    %146 = vmatpush.msra.mxu0 0.0
    %147 = vmatpush.msra.mxu0 0.0
    %148 = vmatpush.msra.mxu0 0.0
    %149 = vmatpush.msra.mxu0 0.0
    %150 = vmatpush.msra.mxu0 0.0
    %151 = vmatpush.msra.mxu0 0.0
    %152 = vmatpush.msra.mxu0 0.0
    %153 = vmatpush.msra.mxu0 0.0
    %154 = vmatpush.msra.mxu0 0.0
    %155 = vmatpush.msra.mxu0 0.0
    %156 = vmatpush.msra.mxu0 0.0
    %157 = vmatpush.msra.mxu0 0.0
    %158 = vmatpush.msra.mxu0 %v32
    %159 = vmatmul.f32.gmra.mxu0 %v46
    %v160 = vpop.f32.mrf.mxu0
    %v161 = vadd.f32 0.0, %v160
    %162 = vmatmul.f32.gmra.mxu0 %v49
    %v163 = vpop.f32.mrf.mxu0
    %v164 = vadd.f32 0.0, %v163
    %165 = vdwg.mxu0
    %166 = vmatpush.msra.mxu0 0.0
    %167 = vmatpush.msra.mxu0 0.0
    %168 = vmatpush.msra.mxu0 0.0
    %169 = vmatpush.msra.mxu0 0.0
    %170 = vmatpush.msra.mxu0 0.0
    %171 = vmatpush.msra.mxu0 0.0
    %172 = vmatpush.msra.mxu0 0.0
    %173 = vmatpush.msra.mxu0 0.0
    %174 = vmatpush.msra.mxu0 0.0
    %175 = vmatpush.msra.mxu0 0.0
    %176 = vmatpush.msra.mxu0 0.0
    %177 = vmatpush.msra.mxu0 0.0
    %178 = vmatpush.msra.mxu0 0.0
    %179 = vmatpush.msra.mxu0 0.0
    %180 = vmatpush.msra.mxu0 0.0
    %181 = vmatpush.msra.mxu0 %v33
    %182 = vmatmul.f32.gmra.mxu0 %v46
    %v183 = vpop.f32.mrf.mxu0
    %v184 = vadd.f32 0.0, %v183
    %185 = vmatmul.f32.gmra.mxu0 %v49
    %v186 = vpop.f32.mrf.mxu0
    %v187 = vadd.f32 0.0, %v186
    %188 = vdwg.mxu0
    %189 = vmatpush.msra.mxu0 0.0
    %190 = vmatpush.msra.mxu0 0.0
    %191 = vmatpush.msra.mxu0 0.0
    %192 = vmatpush.msra.mxu0 0.0
    %193 = vmatpush.msra.mxu0 0.0
    %194 = vmatpush.msra.mxu0 0.0
    %195 = vmatpush.msra.mxu0 0.0
    %196 = vmatpush.msra.mxu0 0.0
    %197 = vmatpush.msra.mxu0 0.0
    %198 = vmatpush.msra.mxu0 0.0
    %199 = vmatpush.msra.mxu0 0.0
    %200 = vmatpush.msra.mxu0 0.0
    %201 = vmatpush.msra.mxu0 0.0
    %202 = vmatpush.msra.mxu0 0.0
    %203 = vmatpush.msra.mxu0 0.0
    %204 = vmatpush.msra.mxu0 %v34
    %205 = vmatmul.f32.gmra.mxu0 %v46
    %v206 = vpop.f32.mrf.mxu0
    %v207 = vadd.f32 0.0, %v206
    %208 = vmatmul.f32.gmra.mxu0 %v49
    %v209 = vpop.f32.mrf.mxu0
    %v210 = vadd.f32 0.0, %v209
    %211 = vdwg.mxu0
    %212 = vmatpush.msra.mxu0 0.0
    %213 = vmatpush.msra.mxu0 0.0
    %214 = vmatpush.msra.mxu0 0.0
    %215 = vmatpush.msra.mxu0 0.0
    %216 = vmatpush.msra.mxu0 0.0
    %217 = vmatpush.msra.mxu0 0.0
    %218 = vmatpush.msra.mxu0 0.0
    %219 = vmatpush.msra.mxu0 0.0
    %220 = vmatpush.msra.mxu0 0.0
    %221 = vmatpush.msra.mxu0 0.0
    %222 = vmatpush.msra.mxu0 0.0
    %223 = vmatpush.msra.mxu0 0.0
    %224 = vmatpush.msra.mxu0 0.0
    %225 = vmatpush.msra.mxu0 0.0
    %226 = vmatpush.msra.mxu0 0.0
    %227 = vmatpush.msra.mxu0 %v35
    %228 = vmatmul.f32.gmra.mxu0 %v46
    %v229 = vpop.f32.mrf.mxu0
    %v230 = vadd.f32 0.0, %v229
    %231 = vmatmul.f32.gmra.mxu0 %v49
    %v232 = vpop.f32.mrf.mxu0
    %v233 = vadd.f32 0.0, %v232
    %234 = vdwg.mxu0
    %235 = vmatpush.msra.mxu0 0.0
    %236 = vmatpush.msra.mxu0 0.0
    %237 = vmatpush.msra.mxu0 0.0
    %238 = vmatpush.msra.mxu0 0.0
    %239 = vmatpush.msra.mxu0 0.0
    %240 = vmatpush.msra.mxu0 0.0
    %241 = vmatpush.msra.mxu0 0.0
    %242 = vmatpush.msra.mxu0 0.0
    %243 = vmatpush.msra.mxu0 0.0
    %244 = vmatpush.msra.mxu0 0.0
    %245 = vmatpush.msra.mxu0 0.0
    %246 = vmatpush.msra.mxu0 0.0
    %247 = vmatpush.msra.mxu0 0.0
    %248 = vmatpush.msra.mxu0 0.0
    %249 = vmatpush.msra.mxu0 0.0
    %250 = vmatpush.msra.mxu0 %v36
    %251 = vmatmul.f32.gmra.mxu0 %v46
    %v252 = vpop.f32.mrf.mxu0
    %v253 = vadd.f32 0.0, %v252
    %254 = vmatmul.f32.gmra.mxu0 %v49
    %v255 = vpop.f32.mrf.mxu0
    %v256 = vadd.f32 0.0, %v255
    %257 = vdwg.mxu0
    %258 = vmatpush.msra.mxu0 0.0
    %259 = vmatpush.msra.mxu0 0.0
    %260 = vmatpush.msra.mxu0 0.0
    %261 = vmatpush.msra.mxu0 0.0
    %262 = vmatpush.msra.mxu0 0.0
    %263 = vmatpush.msra.mxu0 0.0
    %264 = vmatpush.msra.mxu0 0.0
    %265 = vmatpush.msra.mxu0 0.0
    %266 = vmatpush.msra.mxu0 0.0
    %267 = vmatpush.msra.mxu0 0.0
    %268 = vmatpush.msra.mxu0 0.0
    %269 = vmatpush.msra.mxu0 0.0
    %270 = vmatpush.msra.mxu0 0.0
    %271 = vmatpush.msra.mxu0 0.0
    %272 = vmatpush.msra.mxu0 0.0
    %273 = vmatpush.msra.mxu0 %v37
    %274 = vmatmul.f32.gmra.mxu0 %v46
    %v275 = vpop.f32.mrf.mxu0
    %v276 = vadd.f32 0.0, %v275
    %277 = vmatmul.f32.gmra.mxu0 %v49
    %v278 = vpop.f32.mrf.mxu0
    %v279 = vadd.f32 0.0, %v278
    %280 = vdwg.mxu0
    %281 = vmatpush.msra.mxu0 0.0
    %282 = vmatpush.msra.mxu0 0.0
    %283 = vmatpush.msra.mxu0 0.0
    %284 = vmatpush.msra.mxu0 0.0
    %285 = vmatpush.msra.mxu0 0.0
    %286 = vmatpush.msra.mxu0 0.0
    %287 = vmatpush.msra.mxu0 0.0
    %288 = vmatpush.msra.mxu0 0.0
    %289 = vmatpush.msra.mxu0 0.0
    %290 = vmatpush.msra.mxu0 0.0
    %291 = vmatpush.msra.mxu0 0.0
    %292 = vmatpush.msra.mxu0 0.0
    %293 = vmatpush.msra.mxu0 0.0
    %294 = vmatpush.msra.mxu0 0.0
    %295 = vmatpush.msra.mxu0 0.0
    %296 = vmatpush.msra.mxu0 %v38
    %297 = vmatmul.f32.gmra.mxu0 %v46
    %v298 = vpop.f32.mrf.mxu0
    %v299 = vadd.f32 0.0, %v298
    %300 = vmatmul.f32.gmra.mxu0 %v49
    %v301 = vpop.f32.mrf.mxu0
    %v302 = vadd.f32 0.0, %v301
    %303 = vdwg.mxu0
    %304 = vmatpush.msra.mxu0 0.0
    %305 = vmatpush.msra.mxu0 0.0
    %306 = vmatpush.msra.mxu0 0.0
    %307 = vmatpush.msra.mxu0 0.0
    %308 = vmatpush.msra.mxu0 0.0
    %309 = vmatpush.msra.mxu0 0.0
    %310 = vmatpush.msra.mxu0 0.0
    %311 = vmatpush.msra.mxu0 0.0
    %312 = vmatpush.msra.mxu0 0.0
    %313 = vmatpush.msra.mxu0 0.0
    %314 = vmatpush.msra.mxu0 0.0
    %315 = vmatpush.msra.mxu0 0.0
    %316 = vmatpush.msra.mxu0 0.0
    %317 = vmatpush.msra.mxu0 0.0
    %318 = vmatpush.msra.mxu0 0.0
    %319 = vmatpush.msra.mxu0 %v39
    %320 = vmatmul.f32.gmra.mxu0 %v46
    %v321 = vpop.f32.mrf.mxu0
    %v322 = vadd.f32 0.0, %v321
    %323 = vmatmul.f32.gmra.mxu0 %v49
    %v324 = vpop.f32.mrf.mxu0
    %v325 = vadd.f32 0.0, %v324
    %326 = vdwg.mxu0
    %327 = vmatpush.msra.mxu0 0.0
    %328 = vmatpush.msra.mxu0 0.0
    %329 = vmatpush.msra.mxu0 0.0
    %330 = vmatpush.msra.mxu0 0.0
    %331 = vmatpush.msra.mxu0 0.0
    %332 = vmatpush.msra.mxu0 0.0
    %333 = vmatpush.msra.mxu0 0.0
    %334 = vmatpush.msra.mxu0 0.0
    %335 = vmatpush.msra.mxu0 0.0
    %336 = vmatpush.msra.mxu0 0.0
    %337 = vmatpush.msra.mxu0 0.0
    %338 = vmatpush.msra.mxu0 0.0
    %339 = vmatpush.msra.mxu0 0.0
    %340 = vmatpush.msra.mxu0 0.0
    %341 = vmatpush.msra.mxu0 0.0
    %342 = vmatpush.msra.mxu0 %v40
    %343 = vmatmul.f32.gmra.mxu0 %v46
    %v344 = vpop.f32.mrf.mxu0
    %v345 = vadd.f32 0.0, %v344
    %346 = vmatmul.f32.gmra.mxu0 %v49
    %v347 = vpop.f32.mrf.mxu0
    %v348 = vadd.f32 0.0, %v347
    %349 = vdwg.mxu0
    %350 = vmatpush.msra.mxu0 0.0
    %351 = vmatpush.msra.mxu0 0.0
    %352 = vmatpush.msra.mxu0 0.0
    %353 = vmatpush.msra.mxu0 0.0
    %354 = vmatpush.msra.mxu0 0.0
    %355 = vmatpush.msra.mxu0 0.0
    %356 = vmatpush.msra.mxu0 0.0
    %357 = vmatpush.msra.mxu0 0.0
    %358 = vmatpush.msra.mxu0 0.0
    %359 = vmatpush.msra.mxu0 0.0
    %360 = vmatpush.msra.mxu0 0.0
    %361 = vmatpush.msra.mxu0 0.0
    %362 = vmatpush.msra.mxu0 0.0
    %363 = vmatpush.msra.mxu0 0.0
    %364 = vmatpush.msra.mxu0 0.0
    %365 = vmatpush.msra.mxu0 %v41
    %366 = vmatmul.f32.gmra.mxu0 %v46
    %v367 = vpop.f32.mrf.mxu0
    %v368 = vadd.f32 0.0, %v367
    %369 = vmatmul.f32.gmra.mxu0 %v49
    %v370 = vpop.f32.mrf.mxu0
    %v371 = vadd.f32 0.0, %v370
    %372 = vdwg.mxu0
    %373 = vmatpush.msra.mxu0 0.0
    %374 = vmatpush.msra.mxu0 0.0
    %375 = vmatpush.msra.mxu0 0.0
    %376 = vmatpush.msra.mxu0 0.0
    %377 = vmatpush.msra.mxu0 0.0
    %378 = vmatpush.msra.mxu0 0.0
    %379 = vmatpush.msra.mxu0 0.0
    %380 = vmatpush.msra.mxu0 0.0
    %381 = vmatpush.msra.mxu0 0.0
    %382 = vmatpush.msra.mxu0 0.0
    %383 = vmatpush.msra.mxu0 0.0
    %384 = vmatpush.msra.mxu0 0.0
    %385 = vmatpush.msra.mxu0 0.0
    %386 = vmatpush.msra.mxu0 0.0
    %387 = vmatpush.msra.mxu0 0.0
    %388 = vmatpush.msra.mxu0 %v42
    %389 = vmatmul.f32.gmra.mxu0 %v46
    %v390 = vpop.f32.mrf.mxu0
    %v391 = vadd.f32 0.0, %v390
    %392 = vmatmul.f32.gmra.mxu0 %v49
    %v393 = vpop.f32.mrf.mxu0
    %v394 = vadd.f32 0.0, %v393
    %395 = vdwg.mxu0
    %396 = vmatpush.msra.mxu0 0.0
    %397 = vmatpush.msra.mxu0 0.0
    %398 = vmatpush.msra.mxu0 0.0
    %399 = vmatpush.msra.mxu0 0.0
    %400 = vmatpush.msra.mxu0 0.0
    %401 = vmatpush.msra.mxu0 0.0
    %402 = vmatpush.msra.mxu0 0.0
    %403 = vmatpush.msra.mxu0 0.0
    %404 = vmatpush.msra.mxu0 0.0
    %405 = vmatpush.msra.mxu0 0.0
    %406 = vmatpush.msra.mxu0 0.0
    %407 = vmatpush.msra.mxu0 0.0
    %408 = vmatpush.msra.mxu0 0.0
    %409 = vmatpush.msra.mxu0 0.0
    %410 = vmatpush.msra.mxu0 0.0
    %411 = vmatpush.msra.mxu0 %v43
    %412 = vmatmul.f32.gmra.mxu0 %v46
    %v413 = vpop.f32.mrf.mxu0
    %v414 = vadd.f32 0.0, %v413
    %415 = vmatmul.f32.gmra.mxu0 %v49
    %v416 = vpop.f32.mrf.mxu0
    %v417 = vadd.f32 0.0, %v416
    %418 = vdwg.mxu0
    %419 = vst [vmem:[#allocation5] sm:$0xff] %v69
    %420 = vst [vmem:[#allocation5 + $0x8] sm:$0xff] %v92
    %421 = vst [vmem:[#allocation5 + $0x10] sm:$0xff] %v115
    %422 = vst [vmem:[#allocation5 + $0x18] sm:$0xff] %v138
    %423 = vst [vmem:[#allocation5 + $0x20] sm:$0xff] %v161
    %424 = vst [vmem:[#allocation5 + $0x28] sm:$0xff] %v184
    %425 = vst [vmem:[#allocation5 + $0x30] sm:$0xff] %v207
    %426 = vst [vmem:[#allocation5 + $0x38] sm:$0xff] %v230
    %427 = vst [vmem:[#allocation5 + $0x40] sm:$0xff] %v253
    %428 = vst [vmem:[#allocation5 + $0x48] sm:$0xff] %v276
    %429 = vst [vmem:[#allocation5 + $0x50] sm:$0xff] %v299
    %430 = vst [vmem:[#allocation5 + $0x58] sm:$0xff] %v322
    %431 = vst [vmem:[#allocation5 + $0x60] sm:$0xff] %v345
    %432 = vst [vmem:[#allocation5 + $0x68] sm:$0xff] %v368
    %433 = vst [vmem:[#allocation5 + $0x70] sm:$0xff] %v391
    %434 = vst [vmem:[#allocation5 + $0x78] sm:$0xff] %v414
    %435 = vst [vmem:[#allocation5 + $0x80] sm:$0xff] %v72
    %436 = vst [vmem:[#allocation5 + $0x88] sm:$0xff] %v95
    %437 = vst [vmem:[#allocation5 + $0x90] sm:$0xff] %v118
    %438 = vst [vmem:[#allocation5 + $0x98] sm:$0xff] %v141
    %439 = vst [vmem:[#allocation5 + $0xa0] sm:$0xff] %v164
    %440 = vst [vmem:[#allocation5 + $0xa8] sm:$0xff] %v187
    %441 = vst [vmem:[#allocation5 + $0xb0] sm:$0xff] %v210
    %442 = vst [vmem:[#allocation5 + $0xb8] sm:$0xff] %v233
    %443 = vst [vmem:[#allocation5 + $0xc0] sm:$0xff] %v256
    %444 = vst [vmem:[#allocation5 + $0xc8] sm:$0xff] %v279
    %445 = vst [vmem:[#allocation5 + $0xd0] sm:$0xff] %v302
    %446 = vst [vmem:[#allocation5 + $0xd8] sm:$0xff] %v325
    %447 = vst [vmem:[#allocation5 + $0xe0] sm:$0xff] %v348
    %448 = vst [vmem:[#allocation5 + $0xe8] sm:$0xff] %v371
    %449 = vst [vmem:[#allocation5 + $0xf0] sm:$0xff] %v394
    %450 = vst [vmem:[#allocation5 + $0xf8] sm:$0xff] %v417
    // Predicated region
    $region14: #{tpu_custom_call.1} parent=1 // pred_check
      _
    $region15: #{tpu_custom_call.1} parent=1 // pred_check_branch
      %452 = sbr.rel (0) target = $region17
    $region16: #{tpu_custom_call.1} parent=1 // pred_region
      %454 = vsyncadd [#allocation4], 0
      %s455 = sshll.u32 [#allocation5], 4
      %s456 = int_to_ptr.vmem [resolvable:$true] %s455
      %s457 = sshll.u32 %s2, 4
      %s458 = int_to_ptr.hbm [resolvable:$true] %s457
      %463 = dma.vmem_to_hbm [thread:$0]  %s456, 4096, %s458, [#allocation4], 2048, 2048, 128
    $region17: #{tpu_custom_call.1} parent=1 // pred_fallthru
      _
    // Predicated region
    $region18: #{tpu_custom_call.1} parent=1 // pred_check
      _
    $region19: #{tpu_custom_call.1} parent=1 // pred_check_branch
      %465 = sbr.rel (0) target = $region21
    $region20: #{tpu_custom_call.1} parent=1 // pred_region
      %467 = dma.done [#allocation4], 4096
    $region21: #{tpu_custom_call.1} parent=1 // pred_fallthru
      _
    %468 = vsyncpa [#allocation3], 1
    %469 = vsyncpa [#allocation4], 1

</llo_original>
